<compile_context>
chip_gen: v6e
topology: v6e:2x2x1
jax: 0.10.0
libtpu: 0.0.40
codegen_flags: <defaults>
</compile_context>

<pallas_src>
import functools

import jax
import jax.numpy as jnp
import numpy as np
from jax import lax
from jax.experimental import pallas as pl
from jax.experimental.pallas import tpu as pltpu


# ----------------------------- Pallas kernels ------------------------------ #

def _gemm_kernel(x_ref, w_ref, o_ref):
    # One (batch, spatial-tile) step of the direct transposed-conv GEMM.
    #   x_ref : [1, Cin, ts]        bf16  (spatial tile on lanes)
    #   w_ref : [Cin, KK*Cout]      bf16  (lane-dense, resident)
    #   o_ref : [1, KK*Cout, ts]    bf16  (lane-dense store)
    # Contract Cin on the sublane axis of both operands; accumulate in f32 on
    # the MXU, store bf16 (halves HBM writeback; col2im re-accumulates in f32).
    acc = lax.dot_general(
        w_ref[...], x_ref[0],
        dimension_numbers=(((0,), (0,)), ((), ())),
        preferred_element_type=jnp.float32)          # [KK*Cout, ts] f32
    o_ref[0] = acc.astype(o_ref.dtype)


def _bias_gate_kernel(y_ref, bct_ref, wse_ref, bse_ref, o_ref):
    # Fused epilogue for one batch element, channels-first layout throughout:
    #   y_ref : [1, Cout, S] f32   conv output (pre-bias), spatial on lanes
    #   o_ref : [1, Cout, S]       gated output (== NCDHW with flat spatial)
    y = y_ref[0] + bct_ref[...]                       # [C, S] + [C, 1] bias
    pooled = jnp.mean(y, axis=1, keepdims=True)       # [C, 1]  lane reduction
    # SEGating 1x1x1 conv: logits[co] = sum_ci W[co, ci] * pooled[ci] + b[co]
    logits = jnp.dot(wse_ref[...], pooled,
                     preferred_element_type=jnp.float32) + bse_ref[...]
    gate = jax.nn.sigmoid(logits)                     # [C, 1]  (EUP)
    o_ref[0] = (y * gate).astype(o_ref.dtype)         # lane-dense store


# ------------------------------- glue / wrapper ----------------------------- #

@functools.partial(jax.jit, static_argnames=("stride", "padding", "ts"))
def up_conv3d_forward(x, w_ct, b_ct, w_se, b_se, *, stride, padding, ts=512):
    """upConv3D.forward for upmode='transpose', batchnorm=False.

    x:    [N, Cin, T, H, W]            (NCDHW, same as PyTorch)
    w_ct: [Cin, Cout, Kt, Kh, Kw]      (PyTorch ConvTranspose3d weight layout)
    b_ct: [Cout]
    w_se: [Cout, Cout, 1, 1, 1]        (PyTorch Conv3d 1x1x1 weight layout)
    b_se: [Cout]
    returns [N, Cout, To, Ho, Wo]      (NCDHW)
    """
    # TODO(synk): upmode='upsample' branch and BatchNorm3d are not implemented
    # (module defaults: upmode='transpose', batchnorm=False).
    N, Cin, T, H, W = x.shape
    _, Cout, Kt, Kh, Kw = w_ct.shape
    st, sh, sw = stride
    pt, ph, pw = padding
    To = (T - 1) * st - 2 * pt + Kt
    Ho = (H - 1) * sh - 2 * ph + Kh
    Wo = (W - 1) * sw - 2 * pw + Kw
    KK = Kt * Kh * Kw
    KKC = KK * Cout

    # ---- hot path 1: spatial-on-lanes GEMM (Pallas, bf16 in / bf16 out) ---- #
    # X is a free reshape of NCDHW (no transpose).  W2 columns are ordered
    # (kt, kh, kw, co) so per-offset slabs are contiguous Cout blocks.
    Sin = T * H * W
    ts_eff = min(ts, ((Sin + 127) // 128) * 128)      # lane tile, mult of 128
    grid_s = (Sin + ts_eff - 1) // ts_eff             # cdiv grid, no Sin%ts req
    Sp = grid_s * ts_eff
    Xs = x.reshape(N, Cin, Sin).astype(jnp.bfloat16)
    if Sp != Sin:
        Xs = jnp.pad(Xs, ((0, 0), (0, 0), (0, Sp - Sin)))
    W2 = (jnp.transpose(w_ct, (0, 2, 3, 4, 1))
          .reshape(Cin, KKC).astype(jnp.bfloat16))    # [Cin, KK*Cout]

    gemm_cost = pl.CostEstimate(
        flops=int(2 * N * Sp * Cin * KKC),
        transcendentals=0,
        bytes_accessed=int(Xs.size * 2 + W2.size * 2 + N * KKC * Sp * 2))

    # TODO(synk): for production Cin (128-1024), add a K (Cin) grid axis as the
    # last, "arbitrary" dimension with an f32 VMEM accumulator + pl.when init
    # (K tile 256 on v6e/v7x, 128 on v5e) so W2 residency stays bounded on
    # v7x's 64 MiB VMEM.
    y2 = pl.pallas_call(
        _gemm_kernel,
        out_shape=jax.ShapeDtypeStruct((N, KKC, Sp), jnp.bfloat16),
        grid=(N, grid_s),
        in_specs=[
            pl.BlockSpec((1, Cin, ts_eff), lambda n, s: (n, 0, s)),
            pl.BlockSpec((Cin, KKC), lambda n, s: (0, 0)),
        ],
        out_specs=pl.BlockSpec((1, KKC, ts_eff), lambda n, s: (n, 0, s)),
        compiler_params=pltpu.CompilerParams(
            dimension_semantics=("parallel", "parallel"),
            vmem_limit_bytes=32 * 1024 * 1024),
        cost_estimate=gemm_cost,
    )(Xs, W2)

    # ---- col2im scatter-add (XLA glue; reads bf16, accumulates f32) -------- #
    # out[n, co, t*st+kt, h*sh+kh, w*sw+kw] += Y[n, (kt,kh,kw,co), t*H*W+h*W+w]
    # accumulated on an uncropped channels-first buffer, then border-cropped.
    # TODO(synk): fuse this into a Pallas epilogue (sub-pixel phase
    # decomposition) to remove the y2 HBM round trip at production sizes.
    Tb = (T - 1) * st + Kt
    Hb = (H - 1) * sh + Kh
    Wb = (W - 1) * sw + Kw
    y2r = (y2[:, :, :Sin].astype(jnp.float32)
           .reshape(N, Kt, Kh, Kw, Cout, T, H, W))
    buf = jnp.zeros((N, Cout, Tb, Hb, Wb), jnp.float32)
    for kt in range(Kt):
        for kh in range(Kh):
            for kw in range(Kw):
                buf = buf.at[:, :,
                             kt:kt + (T - 1) * st + 1:st,
                             kh:kh + (H - 1) * sh + 1:sh,
                             kw:kw + (W - 1) * sw + 1:sw].add(
                                 y2r[:, kt, kh, kw])
    y_cf = buf[:, :, pt:pt + To, ph:ph + Ho, pw:pw + Wo]  # [N,Cout,To,Ho,Wo]

    # ---- hot path 2: fused bias + SE gating (Pallas, channels-first) ------- #
    S = To * Ho * Wo
    y3 = y_cf.reshape(N, Cout, S)                     # free reshape
    # TODO(synk): for production S (tens of thousands) and for v7x with small
    # batch, grid this kernel over S (two-pass / online pooled accumulator)
    # instead of one [Cout, S] block per batch element.
    out_cs = pl.pallas_call(
        _bias_gate_kernel,
        out_shape=jax.ShapeDtypeStruct((N, Cout, S), x.dtype),
        grid=(N,),
        in_specs=[
            pl.BlockSpec((1, Cout, S), lambda n: (n, 0, 0)),
            pl.BlockSpec((Cout, 1), lambda n: (0, 0)),
            pl.BlockSpec((Cout, Cout), lambda n: (0, 0)),
            pl.BlockSpec((Cout, 1), lambda n: (0, 0)),
        ],
        out_specs=pl.BlockSpec((1, Cout, S), lambda n: (n, 0, 0)),
        compiler_params=pltpu.CompilerParams(
            dimension_semantics=("parallel",),
            vmem_limit_bytes=32 * 1024 * 1024),
    )(y3, b_ct.reshape(Cout, 1), w_se.reshape(Cout, Cout),
      b_se.reshape(Cout, 1))

    # [N, Cout, S] is already NCDHW with flattened spatial dims: free reshape.
    return out_cs.reshape(N, Cout, To, Ho, Wo)


def _reference_forward(x, w_ct, b_ct, w_se, b_se, *, stride, padding):
    """Pure-jnp f32 reference (dilate + pad + flipped-kernel correlation)."""
    N, Cin, T, H, W = x.shape
    _, Cout, Kt, Kh, Kw = w_ct.shape
    st, sh, sw = stride
    pt, ph, pw = padding
    To = (T - 1) * st - 2 * pt + Kt
    Ho = (H - 1) * sh - 2 * ph + Kh
    Wo = (W - 1) * sw - 2 * pw + Kw
    Td, Hd, Wd = (T - 1) * st + 1, (H - 1) * sh + 1, (W - 1) * sw + 1
    xd = jnp.zeros((N, Cin, Td, Hd, Wd), x.dtype)
    xd = xd.at[:, :, ::st, ::sh, ::sw].set(x)
    xp = jnp.pad(xd, ((0, 0), (0, 0),
                      (Kt - 1 - pt, Kt - 1 - pt),
                      (Kh - 1 - ph, Kh - 1 - ph),
                      (Kw - 1 - pw, Kw - 1 - pw)))
    w_flip = w_ct[:, :, ::-1, ::-1, ::-1]
    y = jnp.zeros((N, Cout, To, Ho, Wo), jnp.float32)
    for kt in range(Kt):
        for kh in range(Kh):
            for kw in range(Kw):
                win = xp[:, :, kt:kt + To, kh:kh + Ho, kw:kw + Wo]
                y = y + jnp.einsum('nithw,io->nothw', win,
                                   w_flip[:, :, kt, kh, kw])
    y = y + b_ct[None, :, None, None, None]
    pooled = y.mean(axis=(2, 3, 4))                               # [N, C]
    gate = jax.nn.sigmoid(pooled @ w_se.reshape(Cout, Cout).T + b_se[None, :])
    return y * gate[:, :, None, None, None]


# ---------------------------------- main ----------------------------------- #

if __name__ == "__main__":
    # Module hyperparameters (typical FLAVR decoder settings).
    in_ch, out_ch = 4, 8
    kernel_size = (3, 4, 4)
    stride = (1, 2, 2)
    padding = (1, 1, 1)

    # Small deterministic inputs/parameters.
    N, T, H, W = 2, 4, 8, 8
    key = jax.random.PRNGKey(0)
    k_x, k_w, k_b, k_sw, k_sb = jax.random.split(key, 5)

    x = jax.random.normal(k_x, (N, in_ch, T, H, W), dtype=jnp.float32)
    # ConvTranspose3d params: weight [Cin, Cout, Kt, Kh, Kw], bias [Cout]
    w_ct = 0.1 * jax.random.normal(k_w, (in_ch, out_ch) + kernel_size,
                                   dtype=jnp.float32)
    b_ct = 0.1 * jax.random.normal(k_b, (out_ch,), dtype=jnp.float32)
    # SEGating 1x1x1 conv params: weight [Cout, Cout, 1, 1, 1], bias [Cout]
    w_se = 0.1 * jax.random.normal(k_sw, (out_ch, out_ch, 1, 1, 1),
                                   dtype=jnp.float32)
    b_se = 0.1 * jax.random.normal(k_sb, (out_ch,), dtype=jnp.float32)

    out = up_conv3d_forward(x, w_ct, b_ct, w_se, b_se,
                            stride=stride, padding=padding)
    out = jax.block_until_ready(out)

    ref = _reference_forward(x, w_ct, b_ct, w_se, b_se,
                             stride=stride, padding=padding)
    ref = jax.block_until_ready(ref)

    # Expected output spatial: To=4, Ho=Wo=16 -> (2, 8, 4, 16, 16)
    assert out.shape == (N, out_ch, 4, 16, 16), out.shape
    # bf16 MXU inputs + bf16 GEMM writeback with f32 col2im accumulation ->
    # bf16-level tolerance vs f32 reference.
    np.testing.assert_allclose(np.asarray(out), np.asarray(ref),
                               rtol=2e-2, atol=2e-2)

    print("KERNEL_OK")
</pallas_src>

<mosaic_0001>
module attributes {stable_mosaic.version = 11 : i64} {
  func.func @_gemm_kernel(%arg0: i32, %arg1: i32, %arg2: memref<1x4x256xbf16, #tpu.memory_space<vmem>>, %arg3: memref<4x384xbf16, #tpu.memory_space<vmem>>, %arg4: memref<1x384x256xbf16, #tpu.memory_space<vmem>>) attributes {dimension_semantics = [#tpu.dimension_semantics<parallel>, #tpu.dimension_semantics<parallel>], iteration_bounds = array<i64: 2, 1>, scalar_prefetch = 0 : i64, scratch_operands = 0 : i64, tpu.core_type = #tpu.core_type<tc>, window_params = [{transform_indices = @transform_0, window_bounds = array<i64: 1, 4, 256>}, {pipeline_mode = #tpu.pipeline_mode<synchronous>, transform_indices = @transform_1, window_bounds = array<i64: 4, 384>}, {transform_indices = @transform_2, window_bounds = array<i64: 1, 384, 256>}]} {
    %c0 = arith.constant 0 : index
    %c0_0 = arith.constant 0 : index
    %0 = vector.load %arg3[%c0, %c0_0] : memref<4x384xbf16, #tpu.memory_space<vmem>>, vector<4x384xbf16>
    %c0_1 = arith.constant 0 : index
    %c0_2 = arith.constant 0 : index
    %c0_3 = arith.constant 0 : index
    %1 = vector.load %arg2[%c0_1, %c0_2, %c0_3] : memref<1x4x256xbf16, #tpu.memory_space<vmem>>, vector<1x4x256xbf16>
    %2 = vector.shape_cast %1 : vector<1x4x256xbf16> to vector<4x256xbf16>
    %cst = arith.constant dense<0.000000e+00> : vector<384x256xf32>
    %3 = tpu.matmul %0, %2, %cst {dimension_numbers = #tpu.dot_dimension_numbers<[0], [0], [1], [1], [0, 1, 1, 1], [], []>} : vector<4x384xbf16>, vector<4x256xbf16>, vector<384x256xf32> -> vector<384x256xf32>
    %4 = arith.truncf %3 : vector<384x256xf32> to vector<384x256xbf16>
    %c0_4 = arith.constant 0 : index
    %c0_5 = arith.constant 0 : index
    %c0_6 = arith.constant 0 : index
    %5 = vector.load %arg4[%c0_4, %c0_5, %c0_6] : memref<1x384x256xbf16, #tpu.memory_space<vmem>>, vector<1x384x256xbf16>
    %6 = vector.shape_cast %5 : vector<1x384x256xbf16> to vector<384x256xbf16>
    %7 = vector.shape_cast %4 : vector<384x256xbf16> to vector<1x384x256xbf16>
    tpu.vector_store %arg4[%c0_4, %c0_5, %c0_6], %7 {strides = array<i32>} : memref<1x384x256xbf16, #tpu.memory_space<vmem>>, vector<1x384x256xbf16>,
    return
  }
  func.func @transform_0(%arg0: i32, %arg1: i32) -> (i32, i32, i32) {
    %c0_i32 = arith.constant 0 : i32
    %c0_i32_0 = arith.constant 0 : i32
    return %arg0, %c0_i32, %arg1 : i32, i32, i32
  }
  func.func @transform_1(%arg0: i32, %arg1: i32) -> (i32, i32) {
    %c0_i32 = arith.constant 0 : i32
    %c0_i32_0 = arith.constant 0 : i32
    %c0_i32_1 = arith.constant 0 : i32
    return %c0_i32, %c0_i32_0 : i32, i32
  }
  func.func @transform_2(%arg0: i32, %arg1: i32) -> (i32, i32, i32) {
    %c0_i32 = arith.constant 0 : i32
    %c0_i32_0 = arith.constant 0 : i32
    return %arg0, %c0_i32, %arg1 : i32, i32, i32
  }
}

module attributes {stable_mosaic.version = 11 : i64} {
  func.func @_bias_gate_kernel(%arg0: i32, %arg1: memref<1x8x1024xf32, #tpu.memory_space<vmem>>, %arg2: memref<8x1xf32, #tpu.memory_space<vmem>>, %arg3: memref<8x8xf32, #tpu.memory_space<vmem>>, %arg4: memref<8x1xf32, #tpu.memory_space<vmem>>, %arg5: memref<1x8x1024xf32, #tpu.memory_space<vmem>>) attributes {dimension_semantics = [#tpu.dimension_semantics<parallel>], iteration_bounds = array<i64: 2>, scalar_prefetch = 0 : i64, scratch_operands = 0 : i64, tpu.core_type = #tpu.core_type<tc>, window_params = [{transform_indices = @transform_0, window_bounds = array<i64: 1, 8, 1024>}, {pipeline_mode = #tpu.pipeline_mode<synchronous>, transform_indices = @transform_1, window_bounds = array<i64: 8, 1>}, {pipeline_mode = #tpu.pipeline_mode<synchronous>, transform_indices = @transform_2, window_bounds = array<i64: 8, 8>}, {pipeline_mode = #tpu.pipeline_mode<synchronous>, transform_indices = @transform_3, window_bounds = array<i64: 8, 1>}, {transform_indices = @transform_4, window_bounds = array<i64: 1, 8, 1024>}]} {
    %c0 = arith.constant 0 : index
    %c0_0 = arith.constant 0 : index
    %c0_1 = arith.constant 0 : index
    %0 = vector.load %arg1[%c0, %c0_0, %c0_1] : memref<1x8x1024xf32, #tpu.memory_space<vmem>>, vector<1x8x1024xf32>
    %1 = vector.shape_cast %0 : vector<1x8x1024xf32> to vector<8x1024xf32>
    %c0_2 = arith.constant 0 : index
    %c0_3 = arith.constant 0 : index
    %2 = vector.load %arg2[%c0_2, %c0_3] : memref<8x1xf32, #tpu.memory_space<vmem>>, vector<8x1xf32>
    %3 = vector.broadcast %2 : vector<8x1xf32> to vector<8x1024xf32>
    %4 = arith.addf %1, %3 : vector<8x1024xf32>
    %cst = arith.constant dense<0.000000e+00> : vector<8xf32>
    %5 = vector.multi_reduction <add>, %4, %cst [1] : vector<8x1024xf32> to vector<8xf32>
    %6 = vector.shape_cast %5 : vector<8xf32> to vector<8x1xf32>
    %cst_4 = arith.constant 1.024000e+03 : f32
    %7 = vector.broadcast %cst_4 : f32 to vector<8x1xf32>
    %8 = arith.divf %6, %7 : vector<8x1xf32>
    %c0_5 = arith.constant 0 : index
    %c0_6 = arith.constant 0 : index
    %9 = vector.load %arg3[%c0_5, %c0_6] : memref<8x8xf32, #tpu.memory_space<vmem>>, vector<8x8xf32>
    %cst_7 = arith.constant dense<0.000000e+00> : vector<8x1xf32>
    %10 = tpu.matmul %9, %8, %cst_7 {dimension_numbers = #tpu.dot_dimension_numbers<[1], [0], [0], [1], [0, 0, 1, 1], [], []>} : vector<8x8xf32>, vector<8x1xf32>, vector<8x1xf32> -> vector<8x1xf32>
    %c0_8 = arith.constant 0 : index
    %c0_9 = arith.constant 0 : index
    %11 = vector.load %arg4[%c0_8, %c0_9] : memref<8x1xf32, #tpu.memory_space<vmem>>, vector<8x1xf32>
    %12 = arith.addf %10, %11 : vector<8x1xf32>
    %13 = arith.negf %12 : vector<8x1xf32>
    %14 = math.exp %13 : vector<8x1xf32>
    %cst_10 = arith.constant 1.000000e+00 : f32
    %15 = vector.broadcast %cst_10 : f32 to vector<8x1xf32>
    %16 = arith.addf %15, %14 : vector<8x1xf32>
    %17 = arith.divf %15, %16 : vector<8x1xf32>
    %18 = vector.broadcast %17 : vector<8x1xf32> to vector<8x1024xf32>
    %19 = arith.mulf %4, %18 : vector<8x1024xf32>
    %c0_11 = arith.constant 0 : index
    %c0_12 = arith.constant 0 : index
    %c0_13 = arith.constant 0 : index
    %20 = vector.load %arg5[%c0_11, %c0_12, %c0_13] : memref<1x8x1024xf32, #tpu.memory_space<vmem>>, vector<1x8x1024xf32>
    %21 = vector.shape_cast %20 : vector<1x8x1024xf32> to vector<8x1024xf32>
    %22 = vector.shape_cast %19 : vector<8x1024xf32> to vector<1x8x1024xf32>
    tpu.vector_store %arg5[%c0_11, %c0_12, %c0_13], %22 {strides = array<i32>} : memref<1x8x1024xf32, #tpu.memory_space<vmem>>, vector<1x8x1024xf32>,
    return
  }
  func.func @transform_0(%arg0: i32) -> (i32, i32, i32) {
    %c0_i32 = arith.constant 0 : i32
    %c0_i32_0 = arith.constant 0 : i32
    %c0_i32_1 = arith.constant 0 : i32
    return %arg0, %c0_i32, %c0_i32_0 : i32, i32, i32
  }
  func.func @transform_1(%arg0: i32) -> (i32, i32) {
    %c0_i32 = arith.constant 0 : i32
    %c0_i32_0 = arith.constant 0 : i32
    %c0_i32_1 = arith.constant 0 : i32
    return %c0_i32, %c0_i32_0 : i32, i32
  }
  func.func @transform_2(%arg0: i32) -> (i32, i32) {
    %c0_i32 = arith.constant 0 : i32
    %c0_i32_0 = arith.constant 0 : i32
    %c0_i32_1 = arith.constant 0 : i32
    return %c0_i32, %c0_i32_0 : i32, i32
  }
  func.func @transform_3(%arg0: i32) -> (i32, i32) {
    %c0_i32 = arith.constant 0 : i32
    %c0_i32_0 = arith.constant 0 : i32
    %c0_i32_1 = arith.constant 0 : i32
    return %c0_i32, %c0_i32_0 : i32, i32
  }
  func.func @transform_4(%arg0: i32) -> (i32, i32, i32) {
    %c0_i32 = arith.constant 0 : i32
    %c0_i32_0 = arith.constant 0 : i32
    %c0_i32_1 = arith.constant 0 : i32
    return %arg0, %c0_i32, %c0_i32_0 : i32, i32, i32
  }
}

</mosaic_0001>

<llo_original>
// kernel: up_conv3d_forward.2
$region0: #{up_conv3d_forward.2}
  #allocation0 [shape = 'u32[]', space=smem, size = 0x4, offset = 0x4, fixed_abs, tag = 'smem constant byte address 0x4 - core index']
  #allocation1 [shape = 'u32[144,128]{1,0:T(1,128)}', space=vmem, size = 0x12000, scoped, tag = 'internal scratch']
  %s0 = inlined_call_operand.vmem [shape: bf16[2,4,256], index: 0, kind: input, shape index: {}]
  %s1 = inlined_call_operand.vmem [shape: bf16[4,384], index: 1, kind: input, shape index: {}]
  %s2 = inlined_call_operand.vmem [shape: bf16[2,384,256], index: 2, kind: output, shape index: {}]
  %s3 = sld [smem:[#allocation0]]
  $region41: #{up_conv3d_forward.2} parent=0
    _
  %s5 = ssub.s32 1, %s3
  %s6 = scalar_select 0, %s5, %s3
  loop: start=0, step=1, limit=4
  $region2: #{up_conv3d_forward.2} parent=0 // loop_pre_header
    _
  $region3: #{up_conv3d_forward.2} parent=0 // loop_header
    %s8 = sphi 0, %s12
    %p9 = scmp.ge.s32.totalorder %s8, 4
    %s15 = sphi 0, %s27
    %s16 = sphi 0, %s23
    %s17 = sphi 0, %s15
    %s18 = sphi 0, %s16
    %s19 = sphi 0, %s17
    %s20 = sphi 0, %s18
    %s32 = sphi 0, %s34
    %s35 = sphi 0, %s32
    %s36 = sphi 0, %s35
    %s52 = sphi 0, %s36
    %s56 = sphi 0, %s56
    %s58 = sphi 0, %s56
    %s59 = sphi 0, %s58
    %s73 = sphi 0, %s59
    %s81 = sphi 0, %s83
    %s84 = sphi 0, %s81
    %s85 = sphi 0, %s84
    %s101 = sphi 0, %s85
  $region4: #{up_conv3d_forward.2} parent=0 // loop_header_branch
    %11 = sbr.rel (%p9) target = $region8
  $region5: #{up_conv3d_forward.2} parent=0 // loop_body
    %s13 = ssub.s32 %s8, 1
    %s14 = ssub.s32 %s8, 2
    %s21 = sadd.s32 1, %s16
    %p22 = scmp.ge.s32.totalorder %s21, 1
    %s23 = scalar_select %p22, 0, %s21
    %s24 = sadd.s32 1, %s15
    %s25 = scalar_select %p22, %s24, %s15
    %p26 = scmp.ge.s32.totalorder %s25, 2
    %s27 = scalar_select %p26, 0, %s25
    %s28 = ssub.s32 %s15, %s27
    %s29 = ssub.s32 %s16, %s23
    %s30 = sor.u32 %s28, %s29
    %p31 = scmp.eq.s32.totalorder %s30, 0
    %s33 = sadd.s32 %s32, 1
    %s34 = scalar_select %p31, %s32, %s33
    %p37 = pneg %p31
    %p38 = scmp.eq.s32.totalorder %s8, 1
    %p39 = por %p37, %p38
    %p40 = scmp.ne.s32.totalorder %s32, %s35
    %p41 = scmp.eq.s32.totalorder %s8, 0
    %p42 = por %p40, %p41
    %p43 = scmp.ne.s32.totalorder %s32, %s35
    %p44 = scmp.eq.s32.totalorder %s13, 1
    %p45 = por %p43, %p44
    %p46 = scmp.ne.s32.totalorder %s35, %s36
    %p47 = scmp.eq.s32.totalorder %s13, 0
    %p48 = por %p46, %p47
    %p49 = scmp.ne.s32.totalorder %s35, %s36
    %p50 = scmp.eq.s32.totalorder %s14, 1
    %p51 = por %p49, %p50
    %p53 = scmp.ne.s32.totalorder %s36, %s52
    %p54 = scmp.eq.s32.totalorder %s14, 0
    %p55 = por %p53, %p54
    %s57 = sadd.s32 %s56, 1
    %p60 = scmp.eq.s32.totalorder %s8, 1
    %p61 = scmp.ne.s32.totalorder %s56, %s58
    %p62 = scmp.eq.s32.totalorder %s8, 0
    %p63 = por %p61, %p62
    %p64 = scmp.ne.s32.totalorder %s56, %s58
    %p65 = scmp.eq.s32.totalorder %s13, 1
    %p66 = por %p64, %p65
    %p67 = scmp.ne.s32.totalorder %s58, %s59
    %p68 = scmp.eq.s32.totalorder %s13, 0
    %p69 = por %p67, %p68
    %p70 = scmp.ne.s32.totalorder %s58, %s59
    %p71 = scmp.eq.s32.totalorder %s14, 1
    %p72 = por %p70, %p71
    %p74 = scmp.ne.s32.totalorder %s59, %s73
    %p75 = scmp.eq.s32.totalorder %s14, 0
    %p76 = por %p74, %p75
    %s77 = ssub.s32 %s15, %s27
    %s78 = ssub.s32 %s16, %s23
    %s79 = sor.u32 %s77, %s78
    %p80 = scmp.eq.s32.totalorder %s79, 0
    %s82 = sadd.s32 %s81, 1
    %s83 = scalar_select %p80, %s81, %s82
    %p86 = pneg %p80
    %p87 = scmp.eq.s32.totalorder %s8, 1
    %p88 = por %p86, %p87
    %p89 = scmp.ne.s32.totalorder %s81, %s84
    %p90 = scmp.eq.s32.totalorder %s8, 0
    %p91 = por %p89, %p90
    %p92 = scmp.ne.s32.totalorder %s81, %s84
    %p93 = scmp.eq.s32.totalorder %s13, 1
    %p94 = por %p92, %p93
    %p95 = scmp.ne.s32.totalorder %s84, %s85
    %p96 = scmp.eq.s32.totalorder %s13, 0
    %p97 = por %p95, %p96
    %p98 = scmp.ne.s32.totalorder %s84, %s85
    %p99 = scmp.eq.s32.totalorder %s14, 1
    %p100 = por %p98, %p99
    %p102 = scmp.ne.s32.totalorder %s85, %s101
    %p103 = scmp.eq.s32.totalorder %s14, 0
    %p104 = por %p102, %p103
    %p105 = scmp.le.s32.totalorder 1, %s8
    %p106 = scmp.lt.s32.totalorder %s8, 3
    %p107 = pnand %p105, %p106
    %p108 = pneg %p107
    // Predicated region
    $region9: #{up_conv3d_forward.2} parent=5 // pred_check
      _
    $region10: #{up_conv3d_forward.2} parent=5 // pred_check_branch
      %110 = sbr.rel (%p107) target = $region12
    $region11: #{up_conv3d_forward.2} parent=5 // pred_region
      %s111 = ssub.s32 %s8, 1
      // Predicated region
      $region13: #{up_conv3d_forward.2} parent=11 // pred_check
        %p112 = pneg %p69
      $region14: #{up_conv3d_forward.2} parent=11 // pred_check_branch
        %114 = sbr.rel (%p112) target = $region16
      $region15: #{up_conv3d_forward.2} parent=11 // pred_region
        _
      $region16: #{up_conv3d_forward.2} parent=11 // pred_fallthru
        _
    $region12: #{up_conv3d_forward.2} parent=5 // pred_fallthru
      _
    %p115 = scmp.lt.s32.totalorder %s8, 2
    // Predicated region
    $region17: #{up_conv3d_forward.2} parent=5 // pred_check
      %p116 = pneg %p115
    $region18: #{up_conv3d_forward.2} parent=5 // pred_check_branch
      %118 = sbr.rel (%p116) target = $region20
    $region19: #{up_conv3d_forward.2} parent=5 // pred_region
      // Predicated region
      $region21: #{up_conv3d_forward.2} parent=19 // pred_check
        %p119 = pneg %p42
      $region22: #{up_conv3d_forward.2} parent=19 // pred_check_branch
        %121 = sbr.rel (%p119) target = $region24
      $region23: #{up_conv3d_forward.2} parent=19 // pred_region
        %s122 = smul.u32 2, %s16
        %p123 = scmp.lt.s32.totalorder %s15, 1
        %s124 = scalar_select %p123, %s15, 1
        %p125 = scmp.lt.s32.totalorder %s122, 1
        %s126 = scalar_select %p125, %s122, 1
        %s127 = smul.addr %s124, 2
        %s128 = sadd.s32 %s126, %s127
        %s129 = smul.addr %s128, 2
        %s130 = scalar_lea.vmem %s0, %s129
        %s131 = smul.u32 2, %s16
      $region24: #{up_conv3d_forward.2} parent=19 // pred_fallthru
        _
    $region20: #{up_conv3d_forward.2} parent=5 // pred_fallthru
      _
    %p132 = scmp.le.s32.totalorder 1, %s8
    %p133 = scmp.lt.s32.totalorder %s8, 3
    %p134 = pnand %p132, %p133
    %p135 = pneg %p134
    // Predicated region
    $region25: #{up_conv3d_forward.2} parent=5 // pred_check
      _
    $region26: #{up_conv3d_forward.2} parent=5 // pred_check_branch
      %137 = sbr.rel (%p134) target = $region28
    $region27: #{up_conv3d_forward.2} parent=5 // pred_region
      %s138 = ssub.s32 %s8, 1
      %s139 = smul.u32 2, %s18
      %p140 = scmp.lt.s32.totalorder %s17, 1
      %s141 = scalar_select %p140, %s17, 1
      %p142 = scmp.lt.s32.totalorder %s139, 1
      %s143 = scalar_select %p142, %s139, 1
      %s144 = smul.addr %s141, 2
      %s145 = sadd.s32 %s143, %s144
      %s146 = smul.addr %s145, 2
      %s147 = scalar_lea.vmem %s0, %s146
      %p148 = pneg %p48
      %p149 = pneg %p45
      %p150 = pneg %p69
      %p151 = pneg %p66
      %p152 = pneg %p97
      %p153 = pneg %p94
      %s154 = smul.u32 2, %s18
      %p155 = scmp.lt.s32.totalorder %s17, 1
      %s156 = scalar_select %p155, %s17, 1
      %p157 = scmp.lt.s32.totalorder %s154, 1
      %s158 = scalar_select %p157, %s154, 1
      %s159 = smul.addr %s156, 96
      %s160 = sadd.s32 %s158, %s159
      %s161 = smul.addr %s160, 4
      %s162 = scalar_lea.vmem %s2, %s161
      %s163 = smul.u32 2, %s18
      %p164 = scmp.lt.s32.totalorder %s17, 1
      %s165 = scalar_select %p164, %s17, 1
      %p166 = scmp.lt.s32.totalorder %s163, 1
      %s167 = scalar_select %p166, %s163, 1
      %s168 = smul.addr %s165, 2
      %s169 = sadd.s32 %s167, %s168
      %s170 = smul.addr %s169, 2
      %s171 = scalar_lea.vmem %s0, %s170
      %s172 = smul.u32 2, %s18
      %s173 = smul.u32 2, %s18
      %p174 = scmp.lt.s32.totalorder %s17, 1
      %s175 = scalar_select %p174, %s17, 1
      %p176 = scmp.lt.s32.totalorder %s173, 1
      %s177 = scalar_select %p176, %s173, 1
      %s178 = smul.addr %s175, 96
      %s179 = sadd.s32 %s177, %s178
      %s180 = smul.addr %s179, 4
      %s181 = scalar_lea.vmem %s2, %s180
      %s182 = smul.u32 2, %s18
      %v184 = vld [vmem:[%s1] sm:$0x3f]
      %v185 = vld [vmem:[%s171] sm:$0xf]
      %v187 = vcombine.high %v184, %v184
      %v189 = vunpack.c.l.s4 1983009808
      %v190 = vunpack.c.0.s8 %v189
      %v191 = vlaneseq
      %v192 = vshrl.u32 %v191, 7
      %v193 = vsub.s32 %v190, %v192
      %v194 = vrot.slane %v184, %v193
      %v196 = vunpack.c.l.s4 1983009808
      %v197 = vunpack.c.0.s8 %v196
      %v198 = vlaneseq
      %v199 = vshrl.u32 %v198, 7
      %v200 = vsub.s32 %v197, %v199
      %v201 = vrot.slane %v187, %v200
      %v202 = vcombine.high %v194, %v194
      %206 = vxpose.xlu0.c.b16.start [1/8] %v194, 128
      %207 = vxpose.xlu0.c.b16.cont [2/8] 0, 128
      %208 = vxpose.xlu0.c.b16.cont [3/8] 0, 128
      %209 = vxpose.xlu0.c.b16.cont [4/8] 0, 128
      %210 = vxpose.xlu0.c.b16.cont [5/8] 0, 128
      %211 = vxpose.xlu0.c.b16.cont [6/8] 0, 128
      %212 = vxpose.xlu0.c.b16.cont [7/8] 0, 128
      %213 = vxpose.xlu0.c.b16.end [8/8] 0, 128
      %v214 = vpop.trf.xlu0
      %v215 = vpop.trf.xlu0
      %v216 = vpop.trf.xlu0
      %v217 = vpop.trf.xlu0
      %v218 = vpop.trf.xlu0
      %v219 = vpop.trf.xlu0
      %v220 = vpop.trf.xlu0
      %v221 = vpop.trf.xlu0
      %222 = vxpose.xlu0.c.b16.start [1/8] %v202, 128
      %223 = vxpose.xlu0.c.b16.cont [2/8] 0, 128
      %224 = vxpose.xlu0.c.b16.cont [3/8] 0, 128
      %225 = vxpose.xlu0.c.b16.cont [4/8] 0, 128
      %226 = vxpose.xlu0.c.b16.cont [5/8] 0, 128
      %227 = vxpose.xlu0.c.b16.cont [6/8] 0, 128
      %228 = vxpose.xlu0.c.b16.cont [7/8] 0, 128
      %229 = vxpose.xlu0.c.b16.end [8/8] 0, 128
      %v230 = vpop.trf.xlu0
      %v231 = vpop.trf.xlu0
      %v232 = vpop.trf.xlu0
      %v233 = vpop.trf.xlu0
      %v234 = vpop.trf.xlu0
      %v235 = vpop.trf.xlu0
      %v236 = vpop.trf.xlu0
      %v237 = vpop.trf.xlu0
      %238 = vxpose.xlu0.c.b16.start [1/8] %v201, 128
      %239 = vxpose.xlu0.c.b16.cont [2/8] 0, 128
      %240 = vxpose.xlu0.c.b16.cont [3/8] 0, 128
      %241 = vxpose.xlu0.c.b16.cont [4/8] 0, 128
      %242 = vxpose.xlu0.c.b16.cont [5/8] 0, 128
      %243 = vxpose.xlu0.c.b16.cont [6/8] 0, 128
      %244 = vxpose.xlu0.c.b16.cont [7/8] 0, 128
      %245 = vxpose.xlu0.c.b16.end [8/8] 0, 128
      %v246 = vpop.trf.xlu0
      %v247 = vpop.trf.xlu0
      %v248 = vpop.trf.xlu0
      %v249 = vpop.trf.xlu0
      %v250 = vpop.trf.xlu0
      %v251 = vpop.trf.xlu0
      %v252 = vpop.trf.xlu0
      %v253 = vpop.trf.xlu0
      %v256 = vunpack.c.l.s4 1983009808
      %v257 = vunpack.c.0.s8 %v256
      %v258 = vlaneseq
      %v259 = vshrl.u32 %v258, 7
      %v260 = vsub.s32 %v257, %v259
      %v261 = vrot.slane %v185, %v260
      %v262 = vcombine.high %v261, %v261
      %vm263 = vcmask 31744
      %v265 = vsel %vm263, %v214, 0
      %v268 = vsel %vm263, %v215, 0
      %v271 = vsel %vm263, %v216, 0
      %v274 = vsel %vm263, %v217, 0
      %v277 = vsel %vm263, %v218, 0
      %v280 = vsel %vm263, %v219, 0
      %v283 = vsel %vm263, %v220, 0
      %v286 = vsel %vm263, %v221, 0
      %v289 = vsel %vm263, %v230, 0
      %v292 = vsel %vm263, %v231, 0
      %v295 = vsel %vm263, %v232, 0
      %v298 = vsel %vm263, %v233, 0
      %v301 = vsel %vm263, %v234, 0
      %v304 = vsel %vm263, %v235, 0
      %v307 = vsel %vm263, %v236, 0
      %v310 = vsel %vm263, %v237, 0
      %v313 = vsel %vm263, %v246, 0
      %v316 = vsel %vm263, %v247, 0
      %v319 = vsel %vm263, %v248, 0
      %v322 = vsel %vm263, %v249, 0
      %v325 = vsel %vm263, %v250, 0
      %v328 = vsel %vm263, %v251, 0
      %v331 = vsel %vm263, %v252, 0
      %v334 = vsel %vm263, %v253, 0
      %vm336 = vcmask 1041408
      %v338 = vsel %vm336, %v261, 0
      %v341 = vsel %vm336, %v262, 0
      %343 = vmatprep.subr.bf16.mxu0 0
      %344 = vmatpush1.bf16.msra.mxu0 0
      %345 = vmatprep.subr.bf16.mxu0 0
      %346 = vmatpush1.bf16.msra.mxu0 0
      %347 = vmatprep.subr.bf16.mxu0 0
      %348 = vmatpush1.bf16.msra.mxu0 0
      %349 = vmatprep.subr.bf16.mxu0 0
      %350 = vmatpush1.bf16.msra.mxu0 0
      %351 = vmatprep.subr.bf16.mxu0 0
      %352 = vmatpush1.bf16.msra.mxu0 0
      %353 = vmatprep.subr.bf16.mxu0 0
      %354 = vmatpush1.bf16.msra.mxu0 0
      %355 = vmatprep.subr.bf16.mxu0 0
      %356 = vmatpush1.bf16.msra.mxu0 0
      %357 = vmatprep.subr.bf16.mxu0 %v341
      %358 = vmatpush1.bf16.msra.mxu0 %v338
      %359 = vmatprep.subr.bf16.mxu0 0
      %360 = vmatpush2.bf16.msra.mxu0 0
      %361 = vmatprep.subr.bf16.mxu0 0
      %362 = vmatpush2.bf16.msra.mxu0 0
      %363 = vmatprep.subr.bf16.mxu0 0
      %364 = vmatpush2.bf16.msra.mxu0 0
      %365 = vmatprep.subr.bf16.mxu0 0
      %366 = vmatpush2.bf16.msra.mxu0 0
      %367 = vmatprep.subr.bf16.mxu0 0
      %368 = vmatpush2.bf16.msra.mxu0 0
      %369 = vmatprep.subr.bf16.mxu0 0
      %370 = vmatpush2.bf16.msra.mxu0 0
      %371 = vmatprep.subr.bf16.mxu0 0
      %372 = vmatpush2.bf16.msra.mxu0 0
      %373 = vmatprep.subr.bf16.mxu0 0
      %374 = vmatpush2.bf16.msra.mxu0 0
      %375 = vmatprep.mubr.bf16.mxu0 0
      %376 = vmatmul.mubr.bf16.gmra.mxu0 %v265
      %v377 = vpop.f32.mrf.mxu0
      %v378 = vadd.f32 0.0, %v377
      %v379 = vpop.f32.mrf.mxu0
      %v380 = vadd.f32 0.0, %v379
      %v381 = vpop.f32.mrf.mxu0
      %v382 = vadd.f32 0.0, %v381
      %v383 = vpop.f32.mrf.mxu0
      %v384 = vadd.f32 0.0, %v383
      %385 = vmatprep.mubr.bf16.mxu0 0
      %386 = vmatmul.mubr.bf16.gmra.mxu0 %v268
      %v387 = vpop.f32.mrf.mxu0
      %v388 = vadd.f32 0.0, %v387
      %v389 = vpop.f32.mrf.mxu0
      %v390 = vadd.f32 0.0, %v389
      %v391 = vpop.f32.mrf.mxu0
      %v392 = vadd.f32 0.0, %v391
      %v393 = vpop.f32.mrf.mxu0
      %v394 = vadd.f32 0.0, %v393
      %395 = vmatprep.mubr.bf16.mxu0 0
      %396 = vmatmul.mubr.bf16.gmra.mxu0 %v271
      %v397 = vpop.f32.mrf.mxu0
      %v398 = vadd.f32 0.0, %v397
      %v399 = vpop.f32.mrf.mxu0
      %v400 = vadd.f32 0.0, %v399
      %v401 = vpop.f32.mrf.mxu0
      %v402 = vadd.f32 0.0, %v401
      %v403 = vpop.f32.mrf.mxu0
      %v404 = vadd.f32 0.0, %v403
      %405 = vmatprep.mubr.bf16.mxu0 0
      %406 = vmatmul.mubr.bf16.gmra.mxu0 %v274
      %v407 = vpop.f32.mrf.mxu0
      %v408 = vadd.f32 0.0, %v407
      %v409 = vpop.f32.mrf.mxu0
      %v410 = vadd.f32 0.0, %v409
      %v411 = vpop.f32.mrf.mxu0
      %v412 = vadd.f32 0.0, %v411
      %v413 = vpop.f32.mrf.mxu0
      %v414 = vadd.f32 0.0, %v413
      %415 = vmatprep.mubr.bf16.mxu0 0
      %416 = vmatmul.mubr.bf16.gmra.mxu0 %v277
      %v417 = vpop.f32.mrf.mxu0
      %v418 = vadd.f32 0.0, %v417
      %v419 = vpop.f32.mrf.mxu0
      %v420 = vadd.f32 0.0, %v419
      %v421 = vpop.f32.mrf.mxu0
      %v422 = vadd.f32 0.0, %v421
      %v423 = vpop.f32.mrf.mxu0
      %v424 = vadd.f32 0.0, %v423
      %425 = vmatprep.mubr.bf16.mxu0 0
      %426 = vmatmul.mubr.bf16.gmra.mxu0 %v280
      %v427 = vpop.f32.mrf.mxu0
      %v428 = vadd.f32 0.0, %v427
      %v429 = vpop.f32.mrf.mxu0
      %v430 = vadd.f32 0.0, %v429
      %v431 = vpop.f32.mrf.mxu0
      %v432 = vadd.f32 0.0, %v431
      %v433 = vpop.f32.mrf.mxu0
      %v434 = vadd.f32 0.0, %v433
      %435 = vmatprep.mubr.bf16.mxu0 0
      %436 = vmatmul.mubr.bf16.gmra.mxu0 %v283
      %v437 = vpop.f32.mrf.mxu0
      %v438 = vadd.f32 0.0, %v437
      %v439 = vpop.f32.mrf.mxu0
      %v440 = vadd.f32 0.0, %v439
      %v441 = vpop.f32.mrf.mxu0
      %v442 = vadd.f32 0.0, %v441
      %v443 = vpop.f32.mrf.mxu0
      %v444 = vadd.f32 0.0, %v443
      %445 = vmatprep.mubr.bf16.mxu0 0
      %446 = vmatmul.mubr.bf16.gmra.mxu0 %v286
      %v447 = vpop.f32.mrf.mxu0
      %v448 = vadd.f32 0.0, %v447
      %v449 = vpop.f32.mrf.mxu0
      %v450 = vadd.f32 0.0, %v449
      %v451 = vpop.f32.mrf.mxu0
      %v452 = vadd.f32 0.0, %v451
      %v453 = vpop.f32.mrf.mxu0
      %v454 = vadd.f32 0.0, %v453
      %455 = vmatprep.mubr.bf16.mxu0 0
      %456 = vmatmul.mubr.bf16.gmra.mxu0 %v289
      %v457 = vpop.f32.mrf.mxu0
      %v458 = vadd.f32 0.0, %v457
      %v459 = vpop.f32.mrf.mxu0
      %v460 = vadd.f32 0.0, %v459
      %v461 = vpop.f32.mrf.mxu0
      %v462 = vadd.f32 0.0, %v461
      %v463 = vpop.f32.mrf.mxu0
      %v464 = vadd.f32 0.0, %v463
      %465 = vmatprep.mubr.bf16.mxu0 0
      %466 = vmatmul.mubr.bf16.gmra.mxu0 %v292
      %v467 = vpop.f32.mrf.mxu0
      %v468 = vadd.f32 0.0, %v467
      %v469 = vpop.f32.mrf.mxu0
      %v470 = vadd.f32 0.0, %v469
      %v471 = vpop.f32.mrf.mxu0
      %v472 = vadd.f32 0.0, %v471
      %v473 = vpop.f32.mrf.mxu0
      %v474 = vadd.f32 0.0, %v473
      %475 = vmatprep.mubr.bf16.mxu0 0
      %476 = vmatmul.mubr.bf16.gmra.mxu0 %v295
      %v477 = vpop.f32.mrf.mxu0
      %v478 = vadd.f32 0.0, %v477
      %v479 = vpop.f32.mrf.mxu0
      %v480 = vadd.f32 0.0, %v479
      %v481 = vpop.f32.mrf.mxu0
      %v482 = vadd.f32 0.0, %v481
      %v483 = vpop.f32.mrf.mxu0
      %v484 = vadd.f32 0.0, %v483
      %485 = vmatprep.mubr.bf16.mxu0 0
      %486 = vmatmul.mubr.bf16.gmra.mxu0 %v298
      %v487 = vpop.f32.mrf.mxu0
      %v488 = vadd.f32 0.0, %v487
      %v489 = vpop.f32.mrf.mxu0
      %v490 = vadd.f32 0.0, %v489
      %v491 = vpop.f32.mrf.mxu0
      %v492 = vadd.f32 0.0, %v491
      %v493 = vpop.f32.mrf.mxu0
      %v494 = vadd.f32 0.0, %v493
      %495 = vmatprep.mubr.bf16.mxu0 0
      %496 = vmatmul.mubr.bf16.gmra.mxu0 %v301
      %v497 = vpop.f32.mrf.mxu0
      %v498 = vadd.f32 0.0, %v497
      %v499 = vpop.f32.mrf.mxu0
      %v500 = vadd.f32 0.0, %v499
      %v501 = vpop.f32.mrf.mxu0
      %v502 = vadd.f32 0.0, %v501
      %v503 = vpop.f32.mrf.mxu0
      %v504 = vadd.f32 0.0, %v503
      %505 = vmatprep.mubr.bf16.mxu0 0
      %506 = vmatmul.mubr.bf16.gmra.mxu0 %v304
      %v507 = vpop.f32.mrf.mxu0
      %v508 = vadd.f32 0.0, %v507
      %v509 = vpop.f32.mrf.mxu0
      %v510 = vadd.f32 0.0, %v509
      %v511 = vpop.f32.mrf.mxu0
      %v512 = vadd.f32 0.0, %v511
      %v513 = vpop.f32.mrf.mxu0
      %v514 = vadd.f32 0.0, %v513
      %515 = vmatprep.mubr.bf16.mxu0 0
      %516 = vmatmul.mubr.bf16.gmra.mxu0 %v307
      %v517 = vpop.f32.mrf.mxu0
      %v518 = vadd.f32 0.0, %v517
      %v519 = vpop.f32.mrf.mxu0
      %v520 = vadd.f32 0.0, %v519
      %v521 = vpop.f32.mrf.mxu0
      %v522 = vadd.f32 0.0, %v521
      %v523 = vpop.f32.mrf.mxu0
      %v524 = vadd.f32 0.0, %v523
      %525 = vmatprep.mubr.bf16.mxu0 0
      %526 = vmatmul.mubr.bf16.gmra.mxu0 %v310
      %v527 = vpop.f32.mrf.mxu0
      %v528 = vadd.f32 0.0, %v527
      %v529 = vpop.f32.mrf.mxu0
      %v530 = vadd.f32 0.0, %v529
      %v531 = vpop.f32.mrf.mxu0
      %v532 = vadd.f32 0.0, %v531
      %v533 = vpop.f32.mrf.mxu0
      %v534 = vadd.f32 0.0, %v533
      %535 = vmatprep.mubr.bf16.mxu0 0
      %536 = vmatmul.mubr.bf16.gmra.mxu0 %v313
      %v537 = vpop.f32.mrf.mxu0
      %v538 = vadd.f32 0.0, %v537
      %v539 = vpop.f32.mrf.mxu0
      %v540 = vadd.f32 0.0, %v539
      %v541 = vpop.f32.mrf.mxu0
      %v542 = vadd.f32 0.0, %v541
      %v543 = vpop.f32.mrf.mxu0
      %v544 = vadd.f32 0.0, %v543
      %545 = vmatprep.mubr.bf16.mxu0 0
      %546 = vmatmul.mubr.bf16.gmra.mxu0 %v316
      %v547 = vpop.f32.mrf.mxu0
      %v548 = vadd.f32 0.0, %v547
      %v549 = vpop.f32.mrf.mxu0
      %v550 = vadd.f32 0.0, %v549
      %v551 = vpop.f32.mrf.mxu0
      %v552 = vadd.f32 0.0, %v551
      %v553 = vpop.f32.mrf.mxu0
      %v554 = vadd.f32 0.0, %v553
      %555 = vmatprep.mubr.bf16.mxu0 0
      %556 = vmatmul.mubr.bf16.gmra.mxu0 %v319
      %v557 = vpop.f32.mrf.mxu0
      %v558 = vadd.f32 0.0, %v557
      %v559 = vpop.f32.mrf.mxu0
      %v560 = vadd.f32 0.0, %v559
      %v561 = vpop.f32.mrf.mxu0
      %v562 = vadd.f32 0.0, %v561
      %v563 = vpop.f32.mrf.mxu0
      %v564 = vadd.f32 0.0, %v563
      %565 = vmatprep.mubr.bf16.mxu0 0
      %566 = vmatmul.mubr.bf16.gmra.mxu0 %v322
      %v567 = vpop.f32.mrf.mxu0
      %v568 = vadd.f32 0.0, %v567
      %v569 = vpop.f32.mrf.mxu0
      %v570 = vadd.f32 0.0, %v569
      %v571 = vpop.f32.mrf.mxu0
      %v572 = vadd.f32 0.0, %v571
      %v573 = vpop.f32.mrf.mxu0
      %v574 = vadd.f32 0.0, %v573
      %575 = vmatprep.mubr.bf16.mxu0 0
      %576 = vmatmul.mubr.bf16.gmra.mxu0 %v325
      %v577 = vpop.f32.mrf.mxu0
      %v578 = vadd.f32 0.0, %v577
      %v579 = vpop.f32.mrf.mxu0
      %v580 = vadd.f32 0.0, %v579
      %v581 = vpop.f32.mrf.mxu0
      %v582 = vadd.f32 0.0, %v581
      %v583 = vpop.f32.mrf.mxu0
      %v584 = vadd.f32 0.0, %v583
      %585 = vmatprep.mubr.bf16.mxu0 0
      %586 = vmatmul.mubr.bf16.gmra.mxu0 %v328
      %v587 = vpop.f32.mrf.mxu0
      %v588 = vadd.f32 0.0, %v587
      %v589 = vpop.f32.mrf.mxu0
      %v590 = vadd.f32 0.0, %v589
      %v591 = vpop.f32.mrf.mxu0
      %v592 = vadd.f32 0.0, %v591
      %v593 = vpop.f32.mrf.mxu0
      %v594 = vadd.f32 0.0, %v593
      %595 = vmatprep.mubr.bf16.mxu0 0
      %596 = vmatmul.mubr.bf16.gmra.mxu0 %v331
      %v597 = vpop.f32.mrf.mxu0
      %v598 = vadd.f32 0.0, %v597
      %v599 = vpop.f32.mrf.mxu0
      %v600 = vadd.f32 0.0, %v599
      %v601 = vpop.f32.mrf.mxu0
      %v602 = vadd.f32 0.0, %v601
      %v603 = vpop.f32.mrf.mxu0
      %v604 = vadd.f32 0.0, %v603
      %605 = vmatprep.mubr.bf16.mxu0 0
      %606 = vmatmul.mubr.bf16.gmra.mxu0 %v334
      %v607 = vpop.f32.mrf.mxu0
      %v608 = vadd.f32 0.0, %v607
      %v609 = vpop.f32.mrf.mxu0
      %v610 = vadd.f32 0.0, %v609
      %v611 = vpop.f32.mrf.mxu0
      %v612 = vadd.f32 0.0, %v611
      %v613 = vpop.f32.mrf.mxu0
      %v614 = vadd.f32 0.0, %v613
      %615 = vdwg.mxu0
      %v616 = vpack.c.bf16 %v382, %v378
      %v617 = vpack.c.bf16 %v384, %v380
      %v618 = vpack.c.bf16 %v392, %v388
      %v619 = vpack.c.bf16 %v394, %v390
      %v620 = vpack.c.bf16 %v402, %v398
      %v621 = vpack.c.bf16 %v404, %v400
      %v622 = vpack.c.bf16 %v412, %v408
      %v623 = vpack.c.bf16 %v414, %v410
      %v624 = vpack.c.bf16 %v422, %v418
      %v625 = vpack.c.bf16 %v424, %v420
      %v626 = vpack.c.bf16 %v432, %v428
      %v627 = vpack.c.bf16 %v434, %v430
      %v628 = vpack.c.bf16 %v442, %v438
      %v629 = vpack.c.bf16 %v444, %v440
      %v630 = vpack.c.bf16 %v452, %v448
      %v631 = vpack.c.bf16 %v454, %v450
      %v632 = vpack.c.bf16 %v462, %v458
      %v633 = vpack.c.bf16 %v464, %v460
      %v634 = vpack.c.bf16 %v472, %v468
      %v635 = vpack.c.bf16 %v474, %v470
      %v636 = vpack.c.bf16 %v482, %v478
      %v637 = vpack.c.bf16 %v484, %v480
      %v638 = vpack.c.bf16 %v492, %v488
      %v639 = vpack.c.bf16 %v494, %v490
      %v640 = vpack.c.bf16 %v502, %v498
      %v641 = vpack.c.bf16 %v504, %v500
      %v642 = vpack.c.bf16 %v512, %v508
      %v643 = vpack.c.bf16 %v514, %v510
      %v644 = vpack.c.bf16 %v522, %v518
      %v645 = vpack.c.bf16 %v524, %v520
      %v646 = vpack.c.bf16 %v532, %v528
      %v647 = vpack.c.bf16 %v534, %v530
      %v648 = vpack.c.bf16 %v542, %v538
      %v649 = vpack.c.bf16 %v544, %v540
      %v650 = vpack.c.bf16 %v552, %v548
      %v651 = vpack.c.bf16 %v554, %v550
      %v652 = vpack.c.bf16 %v562, %v558
      %v653 = vpack.c.bf16 %v564, %v560
      %v654 = vpack.c.bf16 %v572, %v568
      %v655 = vpack.c.bf16 %v574, %v570
      %v656 = vpack.c.bf16 %v582, %v578
      %v657 = vpack.c.bf16 %v584, %v580
      %v658 = vpack.c.bf16 %v592, %v588
      %v659 = vpack.c.bf16 %v594, %v590
      %v660 = vpack.c.bf16 %v602, %v598
      %v661 = vpack.c.bf16 %v604, %v600
      %v662 = vpack.c.bf16 %v612, %v608
      %v663 = vpack.c.bf16 %v614, %v610
      %v712 = vunpack.c.l.b16 %v616
      %v713 = vunpack.c.l.b16 %v617
      %v714 = vunpack.c.h.b16 %v616
      %v715 = vunpack.c.h.b16 %v617
      %v716 = vunpack.c.l.b16 %v618
      %v717 = vunpack.c.l.b16 %v619
      %v718 = vunpack.c.h.b16 %v618
      %v719 = vunpack.c.h.b16 %v619
      %v720 = vunpack.c.l.b16 %v620
      %v721 = vunpack.c.l.b16 %v621
      %v722 = vunpack.c.h.b16 %v620
      %v723 = vunpack.c.h.b16 %v621
      %v724 = vunpack.c.l.b16 %v622
      %v725 = vunpack.c.l.b16 %v623
      %v726 = vunpack.c.h.b16 %v622
      %v727 = vunpack.c.h.b16 %v623
      %v728 = vunpack.c.l.b16 %v624
      %v729 = vunpack.c.l.b16 %v625
      %v730 = vunpack.c.h.b16 %v624
      %v731 = vunpack.c.h.b16 %v625
      %v732 = vunpack.c.l.b16 %v626
      %v733 = vunpack.c.l.b16 %v627
      %v734 = vunpack.c.h.b16 %v626
      %v735 = vunpack.c.h.b16 %v627
      %v736 = vunpack.c.l.b16 %v628
      %v737 = vunpack.c.l.b16 %v629
      %v738 = vunpack.c.h.b16 %v628
      %v739 = vunpack.c.h.b16 %v629
      %v740 = vunpack.c.l.b16 %v630
      %v741 = vunpack.c.l.b16 %v631
      %v742 = vunpack.c.h.b16 %v630
      %v743 = vunpack.c.h.b16 %v631
      %v744 = vunpack.c.l.b16 %v632
      %v745 = vunpack.c.l.b16 %v633
      %v746 = vunpack.c.h.b16 %v632
      %v747 = vunpack.c.h.b16 %v633
      %v748 = vunpack.c.l.b16 %v634
      %v749 = vunpack.c.l.b16 %v635
      %v750 = vunpack.c.h.b16 %v634
      %v751 = vunpack.c.h.b16 %v635
      %v752 = vunpack.c.l.b16 %v636
      %v753 = vunpack.c.l.b16 %v637
      %v754 = vunpack.c.h.b16 %v636
      %v755 = vunpack.c.h.b16 %v637
      %v756 = vunpack.c.l.b16 %v638
      %v757 = vunpack.c.l.b16 %v639
      %v758 = vunpack.c.h.b16 %v638
      %v759 = vunpack.c.h.b16 %v639
      %v760 = vunpack.c.l.b16 %v640
      %v761 = vunpack.c.l.b16 %v641
      %v762 = vunpack.c.h.b16 %v640
      %v763 = vunpack.c.h.b16 %v641
      %v764 = vunpack.c.l.b16 %v642
      %v765 = vunpack.c.l.b16 %v643
      %v766 = vunpack.c.h.b16 %v642
      %v767 = vunpack.c.h.b16 %v643
      %v768 = vunpack.c.l.b16 %v644
      %v769 = vunpack.c.l.b16 %v645
      %v770 = vunpack.c.h.b16 %v644
      %v771 = vunpack.c.h.b16 %v645
      %v772 = vunpack.c.l.b16 %v646
      %v773 = vunpack.c.l.b16 %v647
      %v774 = vunpack.c.h.b16 %v646
      %v775 = vunpack.c.h.b16 %v647
      %v776 = vunpack.c.l.b16 %v648
      %v777 = vunpack.c.l.b16 %v649
      %v778 = vunpack.c.h.b16 %v648
      %v779 = vunpack.c.h.b16 %v649
      %v780 = vunpack.c.l.b16 %v650
      %v781 = vunpack.c.l.b16 %v651
      %v782 = vunpack.c.h.b16 %v650
      %v783 = vunpack.c.h.b16 %v651
      %v784 = vunpack.c.l.b16 %v652
      %v785 = vunpack.c.l.b16 %v653
      %v786 = vunpack.c.h.b16 %v652
      %v787 = vunpack.c.h.b16 %v653
      %v788 = vunpack.c.l.b16 %v654
      %v789 = vunpack.c.l.b16 %v655
      %v790 = vunpack.c.h.b16 %v654
      %v791 = vunpack.c.h.b16 %v655
      %v792 = vunpack.c.l.b16 %v656
      %v793 = vunpack.c.l.b16 %v657
      %v794 = vunpack.c.h.b16 %v656
      %v795 = vunpack.c.h.b16 %v657
      %v796 = vunpack.c.l.b16 %v658
      %v797 = vunpack.c.l.b16 %v659
      %v798 = vunpack.c.h.b16 %v658
      %v799 = vunpack.c.h.b16 %v659
      %v800 = vunpack.c.l.b16 %v660
      %v801 = vunpack.c.l.b16 %v661
      %v802 = vunpack.c.h.b16 %v660
      %v803 = vunpack.c.h.b16 %v661
      %v804 = vunpack.c.l.b16 %v662
      %v805 = vunpack.c.l.b16 %v663
      %v806 = vunpack.c.h.b16 %v662
      %v807 = vunpack.c.h.b16 %v663
      %v808 = vpack.c.b16 %v713, %v712
      %v809 = vpack.c.b16 %v715, %v714
      %v810 = vpack.c.b16 %v717, %v716
      %v811 = vpack.c.b16 %v719, %v718
      %v812 = vpack.c.b16 %v721, %v720
      %v813 = vpack.c.b16 %v723, %v722
      %v814 = vpack.c.b16 %v725, %v724
      %v815 = vpack.c.b16 %v727, %v726
      %v816 = vpack.c.b16 %v729, %v728
      %v817 = vpack.c.b16 %v731, %v730
      %v818 = vpack.c.b16 %v733, %v732
      %v819 = vpack.c.b16 %v735, %v734
      %v820 = vpack.c.b16 %v737, %v736
      %v821 = vpack.c.b16 %v739, %v738
      %v822 = vpack.c.b16 %v741, %v740
      %v823 = vpack.c.b16 %v743, %v742
      %v824 = vpack.c.b16 %v745, %v744
      %v825 = vpack.c.b16 %v747, %v746
      %v826 = vpack.c.b16 %v749, %v748
      %v827 = vpack.c.b16 %v751, %v750
      %v828 = vpack.c.b16 %v753, %v752
      %v829 = vpack.c.b16 %v755, %v754
      %v830 = vpack.c.b16 %v757, %v756
      %v831 = vpack.c.b16 %v759, %v758
      %v832 = vpack.c.b16 %v761, %v760
      %v833 = vpack.c.b16 %v763, %v762
      %v834 = vpack.c.b16 %v765, %v764
      %v835 = vpack.c.b16 %v767, %v766
      %v836 = vpack.c.b16 %v769, %v768
      %v837 = vpack.c.b16 %v771, %v770
      %v838 = vpack.c.b16 %v773, %v772
      %v839 = vpack.c.b16 %v775, %v774
      %v840 = vpack.c.b16 %v777, %v776
      %v841 = vpack.c.b16 %v779, %v778
      %v842 = vpack.c.b16 %v781, %v780
      %v843 = vpack.c.b16 %v783, %v782
      %v844 = vpack.c.b16 %v785, %v784
      %v845 = vpack.c.b16 %v787, %v786
      %v846 = vpack.c.b16 %v789, %v788
      %v847 = vpack.c.b16 %v791, %v790
      %v848 = vpack.c.b16 %v793, %v792
      %v849 = vpack.c.b16 %v795, %v794
      %v850 = vpack.c.b16 %v797, %v796
      %v851 = vpack.c.b16 %v799, %v798
      %v852 = vpack.c.b16 %v801, %v800
      %v853 = vpack.c.b16 %v803, %v802
      %v854 = vpack.c.b16 %v805, %v804
      %v855 = vpack.c.b16 %v807, %v806
      %904 = vst [vmem:[%s181] sm:$0xff] %v808
      %905 = vst [vmem:[%s181 + $0x8] sm:$0xff] %v809
      %906 = vst [vmem:[%s181 + $0x10] sm:$0xff] %v810
      %907 = vst [vmem:[%s181 + $0x18] sm:$0xff] %v811
      %908 = vst [vmem:[%s181 + $0x20] sm:$0xff] %v812
      %909 = vst [vmem:[%s181 + $0x28] sm:$0xff] %v813
      %910 = vst [vmem:[%s181 + $0x30] sm:$0xff] %v814
      %911 = vst [vmem:[%s181 + $0x38] sm:$0xff] %v815
      %912 = vst [vmem:[%s181 + $0x40] sm:$0xff] %v816
      %913 = vst [vmem:[%s181 + $0x48] sm:$0xff] %v817
      %914 = vst [vmem:[%s181 + $0x50] sm:$0xff] %v818
      %915 = vst [vmem:[%s181 + $0x58] sm:$0xff] %v819
      %916 = vst [vmem:[%s181 + $0x60] sm:$0xff] %v820
      %917 = vst [vmem:[%s181 + $0x68] sm:$0xff] %v821
      %918 = vst [vmem:[%s181 + $0x70] sm:$0xff] %v822
      %919 = vst [vmem:[%s181 + $0x78] sm:$0xff] %v823
      %920 = vst [vmem:[%s181 + $0x80] sm:$0xff] %v824
      %921 = vst [vmem:[%s181 + $0x88] sm:$0xff] %v825
      %922 = vst [vmem:[%s181 + $0x90] sm:$0xff] %v826
      %923 = vst [vmem:[%s181 + $0x98] sm:$0xff] %v827
      %924 = vst [vmem:[%s181 + $0xa0] sm:$0xff] %v828
      %925 = vst [vmem:[%s181 + $0xa8] sm:$0xff] %v829
      %926 = vst [vmem:[%s181 + $0xb0] sm:$0xff] %v830
      %927 = vst [vmem:[%s181 + $0xb8] sm:$0xff] %v831
      %928 = vst [vmem:[%s181 + $0xc0] sm:$0xff] %v832
      %929 = vst [vmem:[%s181 + $0xc8] sm:$0xff] %v833
      %930 = vst [vmem:[%s181 + $0xd0] sm:$0xff] %v834
      %931 = vst [vmem:[%s181 + $0xd8] sm:$0xff] %v835
      %932 = vst [vmem:[%s181 + $0xe0] sm:$0xff] %v836
      %933 = vst [vmem:[%s181 + $0xe8] sm:$0xff] %v837
      %934 = vst [vmem:[%s181 + $0xf0] sm:$0xff] %v838
      %935 = vst [vmem:[%s181 + $0xf8] sm:$0xff] %v839
      %936 = vst [vmem:[%s181 + $0x100] sm:$0xff] %v840
      %937 = vst [vmem:[%s181 + $0x108] sm:$0xff] %v841
      %938 = vst [vmem:[%s181 + $0x110] sm:$0xff] %v842
      %939 = vst [vmem:[%s181 + $0x118] sm:$0xff] %v843
      %940 = vst [vmem:[%s181 + $0x120] sm:$0xff] %v844
      %941 = vst [vmem:[%s181 + $0x128] sm:$0xff] %v845
      %942 = vst [vmem:[%s181 + $0x130] sm:$0xff] %v846
      %943 = vst [vmem:[%s181 + $0x138] sm:$0xff] %v847
      %944 = vst [vmem:[%s181 + $0x140] sm:$0xff] %v848
      %945 = vst [vmem:[%s181 + $0x148] sm:$0xff] %v849
      %946 = vst [vmem:[%s181 + $0x150] sm:$0xff] %v850
      %947 = vst [vmem:[%s181 + $0x158] sm:$0xff] %v851
      %948 = vst [vmem:[%s181 + $0x160] sm:$0xff] %v852
      %949 = vst [vmem:[%s181 + $0x168] sm:$0xff] %v853
      %950 = vst [vmem:[%s181 + $0x170] sm:$0xff] %v854
      %951 = vst [vmem:[%s181 + $0x178] sm:$0xff] %v855
      %s952 = smul.u32 2, %s18
      %p953 = scmp.lt.s32.totalorder %s17, 1
      %s954 = scalar_select %p953, %s17, 1
      %p955 = scmp.lt.s32.totalorder %s952, 1
      %s956 = scalar_select %p955, %s952, 1
      %s957 = smul.addr %s954, 96
      %s958 = sadd.s32 %s956, %s957
      %s959 = smul.addr %s958, 4
      %s960 = scalar_lea.vmem %s2, %s959
      // Predicated region
      $region29: #{up_conv3d_forward.2} parent=27 // pred_check
        %p961 = pneg %p94
      $region30: #{up_conv3d_forward.2} parent=27 // pred_check_branch
        %963 = sbr.rel (%p961) target = $region32
      $region31: #{up_conv3d_forward.2} parent=27 // pred_region
        %s964 = smul.u32 2, %s18
      $region32: #{up_conv3d_forward.2} parent=27 // pred_fallthru
        _
    $region28: #{up_conv3d_forward.2} parent=5 // pred_fallthru
      _
    %p965 = scmp.le.s32.totalorder 2, %s8
    // Predicated region
    $region33: #{up_conv3d_forward.2} parent=5 // pred_check
      %p966 = pneg %p965
    $region34: #{up_conv3d_forward.2} parent=5 // pred_check_branch
      %968 = sbr.rel (%p966) target = $region36
    $region35: #{up_conv3d_forward.2} parent=5 // pred_region
      %s969 = ssub.s32 %s8, 2
      // Predicated region
      $region37: #{up_conv3d_forward.2} parent=35 // pred_check
        %p970 = pneg %p100
      $region38: #{up_conv3d_forward.2} parent=35 // pred_check_branch
        %972 = sbr.rel (%p970) target = $region40
      $region39: #{up_conv3d_forward.2} parent=35 // pred_region
        %s973 = smul.u32 2, %s20
        %p974 = scmp.lt.s32.totalorder %s19, 1
        %s975 = scalar_select %p974, %s19, 1
        %p976 = scmp.lt.s32.totalorder %s973, 1
        %s977 = scalar_select %p976, %s973, 1
        %s978 = smul.addr %s975, 96
        %s979 = sadd.s32 %s977, %s978
        %s980 = smul.addr %s979, 4
        %s981 = scalar_lea.vmem %s2, %s980
      $region40: #{up_conv3d_forward.2} parent=35 // pred_fallthru
        _
    $region36: #{up_conv3d_forward.2} parent=5 // pred_fallthru
      _
  $region6: #{up_conv3d_forward.2} parent=0 // loop_footer
    %s12 = sadd.s32 1, %s8
  $region7: #{up_conv3d_forward.2} parent=0 // loop_footer_branch
    %7 = sbr.rel target = $region3
  $region8: #{up_conv3d_forward.2} parent=0 // loop_exit
    _

// kernel: up_conv3d_forward.3
$region0: #{up_conv3d_forward.3}
  #allocation0 [shape = 'u32[]', space=smem, size = 0x4, offset = 0x4, fixed_abs, tag = 'smem constant byte address 0x4 - core index']
  #allocation1 [shape = 'u32[144,128]{1,0:T(1,128)}', space=vmem, size = 0x12000, scoped, tag = 'internal scratch']
  %s0 = inlined_call_operand.vmem [shape: f32[2,8,1024], index: 0, kind: input, shape index: {}]
  %s1 = inlined_call_operand.vmem [shape: f32[8,1], index: 1, kind: input, shape index: {}]
  %s2 = inlined_call_operand.vmem [shape: f32[8,8], index: 2, kind: input, shape index: {}]
  %s3 = inlined_call_operand.vmem [shape: f32[8,1], index: 3, kind: input, shape index: {}]
  %s4 = inlined_call_operand.vmem [shape: f32[2,8,1024], index: 4, kind: output, shape index: {}]
  %s5 = sld [smem:[#allocation0]]
  $region49: #{up_conv3d_forward.3} parent=0
    _
  %s7 = ssub.s32 1, %s5
  %s8 = scalar_select 0, %s7, %s5
  loop: start=0, step=1, limit=4
  $region2: #{up_conv3d_forward.3} parent=0 // loop_pre_header
    _
  $region3: #{up_conv3d_forward.3} parent=0 // loop_header
    %s10 = sphi 0, %s14
    %p11 = scmp.ge.s32.totalorder %s10, 4
    %s20 = sphi 0, %s22
    %s23 = sphi 0, %s20
    %s24 = sphi 0, %s23
    %s40 = sphi 0, %s24
    %s44 = sphi 0, %s44
    %s46 = sphi 0, %s44
    %s47 = sphi 0, %s46
    %s61 = sphi 0, %s47
    %s65 = sphi 0, %s65
    %s67 = sphi 0, %s65
    %s68 = sphi 0, %s67
    %s82 = sphi 0, %s68
    %s86 = sphi 0, %s86
    %s88 = sphi 0, %s86
    %s89 = sphi 0, %s88
    %s103 = sphi 0, %s89
    %s109 = sphi 0, %s111
    %s112 = sphi 0, %s109
    %s113 = sphi 0, %s112
    %s129 = sphi 0, %s113
  $region4: #{up_conv3d_forward.3} parent=0 // loop_header_branch
    %13 = sbr.rel (%p11) target = $region8
  $region5: #{up_conv3d_forward.3} parent=0 // loop_body
    %s15 = ssub.s32 %s10, 1
    %s16 = ssub.s32 %s10, 2
    %s17 = sadd.s32 %s10, 1
    %s18 = ssub.s32 %s10, %s17
    %p19 = scmp.eq.s32.totalorder %s18, 0
    %s21 = sadd.s32 %s20, 1
    %s22 = scalar_select %p19, %s20, %s21
    %p25 = pneg %p19
    %p26 = scmp.eq.s32.totalorder %s10, 1
    %p27 = por %p25, %p26
    %p28 = scmp.ne.s32.totalorder %s20, %s23
    %p29 = scmp.eq.s32.totalorder %s10, 0
    %p30 = por %p28, %p29
    %p31 = scmp.ne.s32.totalorder %s20, %s23
    %p32 = scmp.eq.s32.totalorder %s15, 1
    %p33 = por %p31, %p32
    %p34 = scmp.ne.s32.totalorder %s23, %s24
    %p35 = scmp.eq.s32.totalorder %s15, 0
    %p36 = por %p34, %p35
    %p37 = scmp.ne.s32.totalorder %s23, %s24
    %p38 = scmp.eq.s32.totalorder %s16, 1
    %p39 = por %p37, %p38
    %p41 = scmp.ne.s32.totalorder %s24, %s40
    %p42 = scmp.eq.s32.totalorder %s16, 0
    %p43 = por %p41, %p42
    %s45 = sadd.s32 %s44, 1
    %p48 = scmp.eq.s32.totalorder %s10, 1
    %p49 = scmp.ne.s32.totalorder %s44, %s46
    %p50 = scmp.eq.s32.totalorder %s10, 0
    %p51 = por %p49, %p50
    %p52 = scmp.ne.s32.totalorder %s44, %s46
    %p53 = scmp.eq.s32.totalorder %s15, 1
    %p54 = por %p52, %p53
    %p55 = scmp.ne.s32.totalorder %s46, %s47
    %p56 = scmp.eq.s32.totalorder %s15, 0
    %p57 = por %p55, %p56
    %p58 = scmp.ne.s32.totalorder %s46, %s47
    %p59 = scmp.eq.s32.totalorder %s16, 1
    %p60 = por %p58, %p59
    %p62 = scmp.ne.s32.totalorder %s47, %s61
    %p63 = scmp.eq.s32.totalorder %s16, 0
    %p64 = por %p62, %p63
    %s66 = sadd.s32 %s65, 1
    %p69 = scmp.eq.s32.totalorder %s10, 1
    %p70 = scmp.ne.s32.totalorder %s65, %s67
    %p71 = scmp.eq.s32.totalorder %s10, 0
    %p72 = por %p70, %p71
    %p73 = scmp.ne.s32.totalorder %s65, %s67
    %p74 = scmp.eq.s32.totalorder %s15, 1
    %p75 = por %p73, %p74
    %p76 = scmp.ne.s32.totalorder %s67, %s68
    %p77 = scmp.eq.s32.totalorder %s15, 0
    %p78 = por %p76, %p77
    %p79 = scmp.ne.s32.totalorder %s67, %s68
    %p80 = scmp.eq.s32.totalorder %s16, 1
    %p81 = por %p79, %p80
    %p83 = scmp.ne.s32.totalorder %s68, %s82
    %p84 = scmp.eq.s32.totalorder %s16, 0
    %p85 = por %p83, %p84
    %s87 = sadd.s32 %s86, 1
    %p90 = scmp.eq.s32.totalorder %s10, 1
    %p91 = scmp.ne.s32.totalorder %s86, %s88
    %p92 = scmp.eq.s32.totalorder %s10, 0
    %p93 = por %p91, %p92
    %p94 = scmp.ne.s32.totalorder %s86, %s88
    %p95 = scmp.eq.s32.totalorder %s15, 1
    %p96 = por %p94, %p95
    %p97 = scmp.ne.s32.totalorder %s88, %s89
    %p98 = scmp.eq.s32.totalorder %s15, 0
    %p99 = por %p97, %p98
    %p100 = scmp.ne.s32.totalorder %s88, %s89
    %p101 = scmp.eq.s32.totalorder %s16, 1
    %p102 = por %p100, %p101
    %p104 = scmp.ne.s32.totalorder %s89, %s103
    %p105 = scmp.eq.s32.totalorder %s16, 0
    %p106 = por %p104, %p105
    %s107 = ssub.s32 %s10, %s17
    %p108 = scmp.eq.s32.totalorder %s107, 0
    %s110 = sadd.s32 %s109, 1
    %s111 = scalar_select %p108, %s109, %s110
    %p114 = pneg %p108
    %p115 = scmp.eq.s32.totalorder %s10, 1
    %p116 = por %p114, %p115
    %p117 = scmp.ne.s32.totalorder %s109, %s112
    %p118 = scmp.eq.s32.totalorder %s10, 0
    %p119 = por %p117, %p118
    %p120 = scmp.ne.s32.totalorder %s109, %s112
    %p121 = scmp.eq.s32.totalorder %s15, 1
    %p122 = por %p120, %p121
    %p123 = scmp.ne.s32.totalorder %s112, %s113
    %p124 = scmp.eq.s32.totalorder %s15, 0
    %p125 = por %p123, %p124
    %p126 = scmp.ne.s32.totalorder %s112, %s113
    %p127 = scmp.eq.s32.totalorder %s16, 1
    %p128 = por %p126, %p127
    %p130 = scmp.ne.s32.totalorder %s113, %s129
    %p131 = scmp.eq.s32.totalorder %s16, 0
    %p132 = por %p130, %p131
    %p133 = scmp.le.s32.totalorder 1, %s10
    %p134 = scmp.lt.s32.totalorder %s10, 3
    %p135 = pnand %p133, %p134
    %p136 = pneg %p135
    // Predicated region
    $region9: #{up_conv3d_forward.3} parent=5 // pred_check
      _
    $region10: #{up_conv3d_forward.3} parent=5 // pred_check_branch
      %138 = sbr.rel (%p135) target = $region12
    $region11: #{up_conv3d_forward.3} parent=5 // pred_region
      %s139 = ssub.s32 %s10, 1
      // Predicated region
      $region13: #{up_conv3d_forward.3} parent=11 // pred_check
        %p140 = pneg %p57
      $region14: #{up_conv3d_forward.3} parent=11 // pred_check_branch
        %142 = sbr.rel (%p140) target = $region16
      $region15: #{up_conv3d_forward.3} parent=11 // pred_region
        _
      $region16: #{up_conv3d_forward.3} parent=11 // pred_fallthru
        _
      // Predicated region
      $region17: #{up_conv3d_forward.3} parent=11 // pred_check
        %p143 = pneg %p78
      $region18: #{up_conv3d_forward.3} parent=11 // pred_check_branch
        %145 = sbr.rel (%p143) target = $region20
      $region19: #{up_conv3d_forward.3} parent=11 // pred_region
        _
      $region20: #{up_conv3d_forward.3} parent=11 // pred_fallthru
        _
      // Predicated region
      $region21: #{up_conv3d_forward.3} parent=11 // pred_check
        %p146 = pneg %p99
      $region22: #{up_conv3d_forward.3} parent=11 // pred_check_branch
        %148 = sbr.rel (%p146) target = $region24
      $region23: #{up_conv3d_forward.3} parent=11 // pred_region
        _
      $region24: #{up_conv3d_forward.3} parent=11 // pred_fallthru
        _
    $region12: #{up_conv3d_forward.3} parent=5 // pred_fallthru
      _
    %p149 = scmp.lt.s32.totalorder %s10, 2
    // Predicated region
    $region25: #{up_conv3d_forward.3} parent=5 // pred_check
      %p150 = pneg %p149
    $region26: #{up_conv3d_forward.3} parent=5 // pred_check_branch
      %152 = sbr.rel (%p150) target = $region28
    $region27: #{up_conv3d_forward.3} parent=5 // pred_region
      // Predicated region
      $region29: #{up_conv3d_forward.3} parent=27 // pred_check
        %p153 = pneg %p30
      $region30: #{up_conv3d_forward.3} parent=27 // pred_check_branch
        %155 = sbr.rel (%p153) target = $region32
      $region31: #{up_conv3d_forward.3} parent=27 // pred_region
        %p156 = scmp.lt.s32.totalorder %s10, 1
        %s157 = scalar_select %p156, %s10, 1
        %s158 = smul.addr %s157, 8
        %s159 = smul.addr %s158, 8
        %s160 = scalar_lea.vmem %s0, %s159
      $region32: #{up_conv3d_forward.3} parent=27 // pred_fallthru
        _
    $region28: #{up_conv3d_forward.3} parent=5 // pred_fallthru
      _
    %p161 = scmp.le.s32.totalorder 1, %s10
    %p162 = scmp.lt.s32.totalorder %s10, 3
    %p163 = pnand %p161, %p162
    %p164 = pneg %p163
    // Predicated region
    $region33: #{up_conv3d_forward.3} parent=5 // pred_check
      _
    $region34: #{up_conv3d_forward.3} parent=5 // pred_check_branch
      %166 = sbr.rel (%p163) target = $region36
    $region35: #{up_conv3d_forward.3} parent=5 // pred_region
      %s167 = ssub.s32 %s10, 1
      %p168 = scmp.lt.s32.totalorder %s15, 1
      %s169 = scalar_select %p168, %s15, 1
      %s170 = smul.addr %s169, 8
      %s171 = smul.addr %s170, 8
      %s172 = scalar_lea.vmem %s0, %s171
      %p173 = pneg %p36
      %p174 = pneg %p33
      %p175 = pneg %p57
      %p176 = pneg %p54
      %p177 = pneg %p78
      %p178 = pneg %p75
      %p179 = pneg %p99
      %p180 = pneg %p96
      %p181 = pneg %p125
      %p182 = pneg %p122
      %p183 = scmp.lt.s32.totalorder %s15, 1
      %s184 = scalar_select %p183, %s15, 1
      %s185 = smul.addr %s184, 8
      %s186 = smul.addr %s185, 8
      %s187 = scalar_lea.vmem %s4, %s186
      %p188 = scmp.lt.s32.totalorder %s15, 1
      %s189 = scalar_select %p188, %s15, 1
      %s190 = smul.addr %s189, 8
      %s191 = smul.addr %s190, 8
      %s192 = scalar_lea.vmem %s0, %s191
      %p193 = scmp.lt.s32.totalorder %s15, 1
      %s194 = scalar_select %p193, %s15, 1
      %s195 = smul.addr %s194, 8
      %s196 = smul.addr %s195, 8
      %s197 = scalar_lea.vmem %s4, %s196
      %v198 = vld [vmem:[%s192] sm:$0xff]
      %v199 = vld [vmem:[%s192 + $0x8] sm:$0xff]
      %v200 = vld [vmem:[%s192 + $0x10] sm:$0xff]
      %v201 = vld [vmem:[%s192 + $0x18] sm:$0xff]
      %v202 = vld [vmem:[%s192 + $0x20] sm:$0xff]
      %v203 = vld [vmem:[%s192 + $0x28] sm:$0xff]
      %v204 = vld [vmem:[%s192 + $0x30] sm:$0xff]
      %v205 = vld [vmem:[%s192 + $0x38] sm:$0xff]
      %v206 = vld [vmem:[%s1] sm:$0xff]
      %208 = vset.pattern.permute.xlu0 0
      %209 = vperm.xlu0 %208, %v206
      %v210 = vpop.permute.xlu0 %209
      %v212 = vadd.f32 %v198, %v210
      %v213 = vadd.f32 %v199, %v210
      %v214 = vadd.f32 %v200, %v210
      %v215 = vadd.f32 %v201, %v210
      %v216 = vadd.f32 %v202, %v210
      %v217 = vadd.f32 %v203, %v210
      %v218 = vadd.f32 %v204, %v210
      %v219 = vadd.f32 %v205, %v210
      %v220 = vadd.f32 %v212, %v213
      %v221 = vadd.f32 %v220, %v214
      %v222 = vadd.f32 %v221, %v215
      %v223 = vadd.f32 %v222, %v216
      %v224 = vadd.f32 %v223, %v217
      %v225 = vadd.f32 %v224, %v218
      %v226 = vadd.f32 %v225, %v219
      %227 = vadd.xlane.f32.xlu0 %v226
      %v228 = vpop.xlane.xlu0 %227
      %v229 = vrcp.pop 1024.0
      %v230 = vmul.f32 %v228, %v229
      %v231 = vld [vmem:[%s2] sm:$0xff]
      %v232 = vld [vmem:[%s3] sm:$0xff]
      %vm233 = vcmask 64512
      %v235 = vsel %vm233, %v231, 0
      %237 = vmatprep.subr.mxu0 0.0
      %238 = vmatpush1.msra.mxu0 0.0
      %239 = vmatprep.subr.mxu0 0.0
      %240 = vmatpush1.msra.mxu0 0.0
      %241 = vmatprep.subr.mxu0 0.0
      %242 = vmatpush1.msra.mxu0 0.0
      %243 = vmatprep.subr.mxu0 0.0
      %244 = vmatpush1.msra.mxu0 0.0
      %245 = vmatprep.subr.mxu0 0.0
      %246 = vmatpush1.msra.mxu0 0.0
      %247 = vmatprep.subr.mxu0 0.0
      %248 = vmatpush1.msra.mxu0 0.0
      %249 = vmatprep.subr.mxu0 0.0
      %250 = vmatpush1.msra.mxu0 0.0
      %251 = vmatprep.subr.mxu0 0.0
      %252 = vmatpush1.msra.mxu0 0.0
      %253 = vmatprep.subr.mxu0 0.0
      %254 = vmatpush1.msra.mxu0 0.0
      %255 = vmatprep.subr.mxu0 0.0
      %256 = vmatpush1.msra.mxu0 0.0
      %257 = vmatprep.subr.mxu0 0.0
      %258 = vmatpush1.msra.mxu0 0.0
      %259 = vmatprep.subr.mxu0 0.0
      %260 = vmatpush1.msra.mxu0 0.0
      %261 = vmatprep.subr.mxu0 0.0
      %262 = vmatpush1.msra.mxu0 0.0
      %263 = vmatprep.subr.mxu0 0.0
      %264 = vmatpush1.msra.mxu0 0.0
      %265 = vmatprep.subr.mxu0 0.0
      %266 = vmatpush1.msra.mxu0 0.0
      %267 = vmatprep.subr.mxu0 0.0
      %268 = vmatpush1.msra.mxu0 %v230
      %269 = vmatprep.subr.mxu0 0.0
      %270 = vmatpush2.msra.mxu0 0.0
      %271 = vmatprep.subr.mxu0 0.0
      %272 = vmatpush2.msra.mxu0 0.0
      %273 = vmatprep.subr.mxu0 0.0
      %274 = vmatpush2.msra.mxu0 0.0
      %275 = vmatprep.subr.mxu0 0.0
      %276 = vmatpush2.msra.mxu0 0.0
      %277 = vmatprep.subr.mxu0 0.0
      %278 = vmatpush2.msra.mxu0 0.0
      %279 = vmatprep.subr.mxu0 0.0
      %280 = vmatpush2.msra.mxu0 0.0
      %281 = vmatprep.subr.mxu0 0.0
      %282 = vmatpush2.msra.mxu0 0.0
      %283 = vmatprep.subr.mxu0 0.0
      %284 = vmatpush2.msra.mxu0 0.0
      %285 = vmatprep.subr.mxu0 0.0
      %286 = vmatpush2.msra.mxu0 0.0
      %287 = vmatprep.subr.mxu0 0.0
      %288 = vmatpush2.msra.mxu0 0.0
      %289 = vmatprep.subr.mxu0 0.0
      %290 = vmatpush2.msra.mxu0 0.0
      %291 = vmatprep.subr.mxu0 0.0
      %292 = vmatpush2.msra.mxu0 0.0
      %293 = vmatprep.subr.mxu0 0.0
      %294 = vmatpush2.msra.mxu0 0.0
      %295 = vmatprep.subr.mxu0 0.0
      %296 = vmatpush2.msra.mxu0 0.0
      %297 = vmatprep.subr.mxu0 0.0
      %298 = vmatpush2.msra.mxu0 0.0
      %299 = vmatprep.subr.mxu0 0.0
      %300 = vmatpush2.msra.mxu0 0.0
      %301 = vmatprep.mubr.f32.mxu0 0.0
      %302 = vmatmul.mubr.f32.gmra.mxu0 %v235
      %v303 = vpop.f32.mrf.mxu0
      %v304 = vadd.f32 %v232, %v303
      %v305 = vpop.f32.mrf.mxu0
      %306 = vdwg.mxu0
      %v307 = vxor.u32 %v304, 2147483648
      %v308 = vmul.f32 %v307, 1.442695
      %v309 = vpow.pop %v308
      %v310 = vadd.f32 %v309, 1.0
      %v311 = vrcp.pop %v310
      %v312 = vmul.f32 1.0, %v311
      %314 = vset.pattern.permute.xlu0 0
      %315 = vperm.xlu0 %314, %v312
      %v316 = vpop.permute.xlu0 %315
      %v318 = vmul.f32 %v212, %v316
      %v319 = vmul.f32 %v213, %v316
      %v320 = vmul.f32 %v214, %v316
      %v321 = vmul.f32 %v215, %v316
      %v322 = vmul.f32 %v216, %v316
      %v323 = vmul.f32 %v217, %v316
      %v324 = vmul.f32 %v218, %v316
      %v325 = vmul.f32 %v219, %v316
      %326 = vst [vmem:[%s197] sm:$0xff] %v318
      %327 = vst [vmem:[%s197 + $0x8] sm:$0xff] %v319
      %328 = vst [vmem:[%s197 + $0x10] sm:$0xff] %v320
      %329 = vst [vmem:[%s197 + $0x18] sm:$0xff] %v321
      %330 = vst [vmem:[%s197 + $0x20] sm:$0xff] %v322
      %331 = vst [vmem:[%s197 + $0x28] sm:$0xff] %v323
      %332 = vst [vmem:[%s197 + $0x30] sm:$0xff] %v324
      %333 = vst [vmem:[%s197 + $0x38] sm:$0xff] %v325
      %p334 = scmp.lt.s32.totalorder %s15, 1
      %s335 = scalar_select %p334, %s15, 1
      %s336 = smul.addr %s335, 8
      %s337 = smul.addr %s336, 8
      %s338 = scalar_lea.vmem %s4, %s337
      // Predicated region
      $region37: #{up_conv3d_forward.3} parent=35 // pred_check
        %p339 = pneg %p122
      $region38: #{up_conv3d_forward.3} parent=35 // pred_check_branch
        %341 = sbr.rel (%p339) target = $region40
      $region39: #{up_conv3d_forward.3} parent=35 // pred_region
        _
      $region40: #{up_conv3d_forward.3} parent=35 // pred_fallthru
        _
    $region36: #{up_conv3d_forward.3} parent=5 // pred_fallthru
      _
    %p342 = scmp.le.s32.totalorder 2, %s10
    // Predicated region
    $region41: #{up_conv3d_forward.3} parent=5 // pred_check
      %p343 = pneg %p342
    $region42: #{up_conv3d_forward.3} parent=5 // pred_check_branch
      %345 = sbr.rel (%p343) target = $region44
    $region43: #{up_conv3d_forward.3} parent=5 // pred_region
      %s346 = ssub.s32 %s10, 2
      // Predicated region
      $region45: #{up_conv3d_forward.3} parent=43 // pred_check
        %p347 = pneg %p128
      $region46: #{up_conv3d_forward.3} parent=43 // pred_check_branch
        %349 = sbr.rel (%p347) target = $region48
      $region47: #{up_conv3d_forward.3} parent=43 // pred_region
        %p350 = scmp.lt.s32.totalorder %s16, 1
        %s351 = scalar_select %p350, %s16, 1
        %s352 = smul.addr %s351, 8
        %s353 = smul.addr %s352, 8
        %s354 = scalar_lea.vmem %s4, %s353
      $region48: #{up_conv3d_forward.3} parent=43 // pred_fallthru
        _
    $region44: #{up_conv3d_forward.3} parent=5 // pred_fallthru
      _
  $region6: #{up_conv3d_forward.3} parent=0 // loop_footer
    %s14 = sadd.s32 1, %s10
  $region7: #{up_conv3d_forward.3} parent=0 // loop_footer_branch
    %9 = sbr.rel target = $region3
  $region8: #{up_conv3d_forward.3} parent=0 // loop_exit
    _

</llo_original>
